<compile_context>
chip_gen: v6e
topology: v6e:2x2x1
jax: 0.10.0
libtpu: 0.0.40
codegen_flags: <defaults>
</compile_context>

<pallas_src>
import jax
import jax.numpy as jnp
import numpy as np
from jax.experimental import pallas as pl
from jax.experimental.pallas import tpu as pltpu


def make_mha_kernel(head_size: int):
    scale = 1.0 / float(head_size) ** 0.5

    def kernel(x_ref, y_ref, dagT_ref,
               wq_ref, wk_ref, wv_ref,
               bq_ref, bk_ref, bv_ref,
               wp_ref, bp_ref,
               out_ref, acc_ref):
        h = pl.program_id(1)

        x = x_ref[0]                       # [S, D]  (X feeds K and V)
        y = y_ref[0]                       # [S, D]  (Y feeds Q)

        q = jnp.dot(y, wq_ref[0], preferred_element_type=jnp.float32) + bq_ref[0]
        k = jnp.dot(x, wk_ref[0], preferred_element_type=jnp.float32) + bk_ref[0]
        v = jnp.dot(x, wv_ref[0], preferred_element_type=jnp.float32) + bv_ref[0]

        # S_qk = Q @ K^T / sqrt(head_size)   (contract last dims, no transpose copy)
        s_qk = jax.lax.dot_general(
            q, k, (((1,), (1,)), ((), ())),
            preferred_element_type=jnp.float32) * scale          # [S, S]

        # Sprime = dag.T * S_qk ; masked_fill(Sprime == 0, -inf) ; softmax ;
        # rows that are entirely masked -> zeros (PyTorch NaN-row zeroing).
        sprime = dagT_ref[...] * s_qk                            # [S, S]
        valid = sprime != 0.0
        masked = jnp.where(valid, sprime, jnp.float32(-3.0e38))
        row_max = jnp.max(masked, axis=-1, keepdims=True)        # [S, 1]
        e = jnp.exp(jnp.where(valid, sprime - row_max, jnp.float32(-1e9)))
        denom = jnp.sum(e, axis=-1, keepdims=True)               # [S, 1]
        denom_safe = jnp.where(denom > 0.0, denom, jnp.float32(1.0))
        p = e * pl.reciprocal(denom_safe, approx=True)           # all-masked rows -> 0

        o_h = jnp.dot(p, v, preferred_element_type=jnp.float32)  # [S, Hs]

        # Accumulate this head's slice of the output projection in VMEM.
        @pl.when(h == 0)
        def _():
            acc_ref[...] = jnp.zeros_like(acc_ref)

        acc_ref[...] += jnp.dot(o_h, wp_ref[0],
                                preferred_element_type=jnp.float32)  # [S, D]

        @pl.when(h == pl.num_programs(1) - 1)
        def _():
            # projection bias; dropout is identity in eval mode.
            out_ref[0] = (acc_ref[...] + bp_ref[...]).astype(out_ref.dtype)

    return kernel


def mha_forward_pallas(X, Y, dagT, wq, wk, wv, bq, bk, bv, wp, bp, *, head_size):
    B, S, D = X.shape
    H, _, Hs = wq.shape

    kernel = make_mha_kernel(head_size)

    grid_spec = pltpu.PrefetchScalarGridSpec(
        num_scalar_prefetch=0,
        grid=(B, H),
        in_specs=[
            pl.BlockSpec((1, S, D), lambda b, h: (b, 0, 0)),    # X
            pl.BlockSpec((1, S, D), lambda b, h: (b, 0, 0)),    # Y
            pl.BlockSpec((S, S), lambda b, h: (0, 0)),          # dag.T
            pl.BlockSpec((1, D, Hs), lambda b, h: (h, 0, 0)),   # Wq (per head)
            pl.BlockSpec((1, D, Hs), lambda b, h: (h, 0, 0)),   # Wk
            pl.BlockSpec((1, D, Hs), lambda b, h: (h, 0, 0)),   # Wv
            pl.BlockSpec((1, 1, Hs), lambda b, h: (h, 0, 0)),   # bq
            pl.BlockSpec((1, 1, Hs), lambda b, h: (h, 0, 0)),   # bk
            pl.BlockSpec((1, 1, Hs), lambda b, h: (h, 0, 0)),   # bv
            pl.BlockSpec((1, Hs, D), lambda b, h: (h, 0, 0)),   # Wproj slice
            pl.BlockSpec((1, D), lambda b, h: (0, 0)),          # bproj
        ],
        out_specs=pl.BlockSpec((1, S, D), lambda b, h: (b, 0, 0)),
        scratch_shapes=[pltpu.VMEM((S, D), jnp.float32)],
    )

    return pl.pallas_call(
        kernel,
        out_shape=jax.ShapeDtypeStruct((B, S, D), X.dtype),
        grid_spec=grid_spec,
        compiler_params=pltpu.CompilerParams(
            dimension_semantics=("parallel", "arbitrary"),
            vmem_limit_bytes=32 * 1024 * 1024),
    )(X, Y, dagT, wq, wk, wv, bq, bk, bv, wp, bp)


class MultiHeadAttentionPallas:
    """Mirrors CaT MultiHeadAttention.forward (eval mode) with a Pallas kernel."""

    def __init__(self, num_heads, input_dim, head_size, dag,
                 use_bias=False, key=None):
        self.num_heads = H = num_heads
        self.input_dim = D = input_dim
        self.head_size = Hs = head_size
        self.use_bias = use_bias

        key = jax.random.PRNGKey(0) if key is None else key
        k = jax.random.split(key, 8)
        s_in = 1.0 / np.sqrt(D)
        s_pr = 1.0 / np.sqrt(H * Hs)

        # Weights stored pre-transposed: y = x @ W (+ b), per head.
        self.wq = jax.random.uniform(k[0], (H, D, Hs), jnp.float32, -s_in, s_in)
        self.wk = jax.random.uniform(k[1], (H, D, Hs), jnp.float32, -s_in, s_in)
        self.wv = jax.random.uniform(k[2], (H, D, Hs), jnp.float32, -s_in, s_in)
        if use_bias:
            self.bq = jax.random.uniform(k[3], (H, 1, Hs), jnp.float32, -s_in, s_in)
            self.bk = jax.random.uniform(k[4], (H, 1, Hs), jnp.float32, -s_in, s_in)
            self.bv = jax.random.uniform(k[5], (H, 1, Hs), jnp.float32, -s_in, s_in)
        else:
            self.bq = jnp.zeros((H, 1, Hs), jnp.float32)
            self.bk = jnp.zeros((H, 1, Hs), jnp.float32)
            self.bv = jnp.zeros((H, 1, Hs), jnp.float32)
        # projection: Linear(H*Hs -> D, bias=True); per-head [Hs, D] slices.
        self.wp = jax.random.uniform(k[6], (H, Hs, D), jnp.float32, -s_pr, s_pr)
        self.bp = jax.random.uniform(k[7], (1, D), jnp.float32, -s_pr, s_pr)

        self.dagT = jnp.asarray(dag, jnp.float32).T

    def __call__(self, X, Y):
        return mha_forward_pallas(
            X, Y, self.dagT, self.wq, self.wk, self.wv,
            self.bq, self.bk, self.bv, self.wp, self.bp,
            head_size=self.head_size)


def reference_forward_np(X, Y, dagT, wq, wk, wv, bq, bk, bv, wp, bp, head_size):
    """Pure numpy replica of the PyTorch forward (eval mode)."""
    X = np.asarray(X, np.float32)
    Y = np.asarray(Y, np.float32)
    dagT = np.asarray(dagT, np.float32)
    H = wq.shape[0]
    heads = []
    with np.errstate(invalid="ignore", over="ignore", divide="ignore"):
        for h in range(H):
            Q = Y @ np.asarray(wq[h]) + np.asarray(bq[h])
            K = X @ np.asarray(wk[h]) + np.asarray(bk[h])
            V = X @ np.asarray(wv[h]) + np.asarray(bv[h])
            S_qk = np.einsum("bsh,bth->bst", Q, K) / np.sqrt(float(head_size))
            Sp = dagT[None, :, :] * S_qk
            Sp = np.where(Sp == 0.0, -np.inf, Sp)
            m = np.max(Sp, axis=-1, keepdims=True)
            e = np.exp(Sp - m)
            P = e / np.sum(e, axis=-1, keepdims=True)
            nan_rows = np.any(np.isnan(P), axis=-1, keepdims=True)
            P = np.where(nan_rows, 0.0, P)
            heads.append(P @ V)
    O_cat = np.concatenate(heads, axis=-1)                                  # [B,S,H*Hs]
    Wp_full = np.concatenate([np.asarray(wp[h]) for h in range(H)], axis=0)  # [H*Hs, D]
    return O_cat @ Wp_full + np.asarray(bp)


if __name__ == "__main__":
    # ---- deterministic synthetic setup (small shapes) ----
    B, S, D, H, Hs = 2, 8, 32, 4, 16   # batch, seq (num vars), input_dim, heads, head_size

    key = jax.random.PRNGKey(0)
    kx, ky, kw = jax.random.split(key, 3)
    X = jax.random.normal(kx, (B, S, D), dtype=jnp.float32)
    Y = jax.random.normal(ky, (B, S, D), dtype=jnp.float32)

    # DAG adjacency (strictly lower-triangular) -> dag.T has an all-zero row,
    # exercising the all-masked-row / NaN-zeroing path.
    dag_np = np.tril(np.ones((S, S), dtype=np.float32), k=-1)
    dag = jnp.asarray(dag_np)

    mha = MultiHeadAttentionPallas(num_heads=H, input_dim=D, head_size=Hs,
                                   dag=dag, use_bias=False, key=kw)

    out = mha(X, Y)
    out = jax.block_until_ready(out)

    ref = reference_forward_np(X, Y, mha.dagT, mha.wq, mha.wk, mha.wv,
                               mha.bq, mha.bk, mha.bv, mha.wp, mha.bp,
                               head_size=Hs)

    np.testing.assert_allclose(np.asarray(out), ref, rtol=2e-2, atol=2e-2)
    print("KERNEL_OK")
</pallas_src>

<mosaic_0001>
module attributes {stable_mosaic.version = 11 : i64} {
  func.func @kernel(%arg0: i32, %arg1: i32, %arg2: memref<1x8x32xf32, #tpu.memory_space<vmem>>, %arg3: memref<1x8x32xf32, #tpu.memory_space<vmem>>, %arg4: memref<8x8xf32, #tpu.memory_space<vmem>>, %arg5: memref<1x32x16xf32, #tpu.memory_space<vmem>>, %arg6: memref<1x32x16xf32, #tpu.memory_space<vmem>>, %arg7: memref<1x32x16xf32, #tpu.memory_space<vmem>>, %arg8: memref<1x1x16xf32, #tpu.memory_space<vmem>>, %arg9: memref<1x1x16xf32, #tpu.memory_space<vmem>>, %arg10: memref<1x1x16xf32, #tpu.memory_space<vmem>>, %arg11: memref<1x16x32xf32, #tpu.memory_space<vmem>>, %arg12: memref<1x32xf32, #tpu.memory_space<vmem>>, %arg13: memref<1x8x32xf32, #tpu.memory_space<vmem>>, %arg14: memref<8x32xf32, #tpu.memory_space<vmem>>) attributes {dimension_semantics = [#tpu.dimension_semantics<parallel>, #tpu.dimension_semantics<arbitrary>], iteration_bounds = array<i64: 2, 4>, scalar_prefetch = 0 : i64, scratch_operands = 1 : i64, tpu.core_type = #tpu.core_type<tc>, window_params = [{transform_indices = @transform_0, window_bounds = array<i64: 1, 8, 32>}, {transform_indices = @transform_1, window_bounds = array<i64: 1, 8, 32>}, {pipeline_mode = #tpu.pipeline_mode<synchronous>, transform_indices = @transform_2, window_bounds = array<i64: 8, 8>}, {transform_indices = @transform_3, window_bounds = array<i64: 1, 32, 16>}, {transform_indices = @transform_4, window_bounds = array<i64: 1, 32, 16>}, {transform_indices = @transform_5, window_bounds = array<i64: 1, 32, 16>}, {transform_indices = @transform_6, window_bounds = array<i64: 1, 1, 16>}, {transform_indices = @transform_7, window_bounds = array<i64: 1, 1, 16>}, {transform_indices = @transform_8, window_bounds = array<i64: 1, 1, 16>}, {transform_indices = @transform_9, window_bounds = array<i64: 1, 16, 32>}, {pipeline_mode = #tpu.pipeline_mode<synchronous>, transform_indices = @transform_10, window_bounds = array<i64: 1, 32>}, {transform_indices = @transform_11, window_bounds = array<i64: 1, 8, 32>}]} {
    %c0 = arith.constant 0 : index
    %c0_0 = arith.constant 0 : index
    %c0_1 = arith.constant 0 : index
    %0 = vector.load %arg2[%c0, %c0_0, %c0_1] : memref<1x8x32xf32, #tpu.memory_space<vmem>>, vector<1x8x32xf32>
    %1 = vector.shape_cast %0 : vector<1x8x32xf32> to vector<8x32xf32>
    %c0_2 = arith.constant 0 : index
    %c0_3 = arith.constant 0 : index
    %c0_4 = arith.constant 0 : index
    %2 = vector.load %arg3[%c0_2, %c0_3, %c0_4] : memref<1x8x32xf32, #tpu.memory_space<vmem>>, vector<1x8x32xf32>
    %3 = vector.shape_cast %2 : vector<1x8x32xf32> to vector<8x32xf32>
    %c0_5 = arith.constant 0 : index
    %c0_6 = arith.constant 0 : index
    %c0_7 = arith.constant 0 : index
    %4 = vector.load %arg5[%c0_5, %c0_6, %c0_7] : memref<1x32x16xf32, #tpu.memory_space<vmem>>, vector<1x32x16xf32>
    %5 = vector.shape_cast %4 : vector<1x32x16xf32> to vector<32x16xf32>
    %cst = arith.constant dense<0.000000e+00> : vector<8x16xf32>
    %6 = tpu.matmul %3, %5, %cst {dimension_numbers = #tpu.dot_dimension_numbers<[1], [0], [0], [1], [0, 0, 1, 1], [], []>} : vector<8x32xf32>, vector<32x16xf32>, vector<8x16xf32> -> vector<8x16xf32>
    %c0_8 = arith.constant 0 : index
    %c0_9 = arith.constant 0 : index
    %c0_10 = arith.constant 0 : index
    %7 = vector.load %arg8[%c0_8, %c0_9, %c0_10] : memref<1x1x16xf32, #tpu.memory_space<vmem>>, vector<1x1x16xf32>
    %8 = vector.shape_cast %7 : vector<1x1x16xf32> to vector<1x16xf32>
    %9 = vector.broadcast %8 : vector<1x16xf32> to vector<8x16xf32>
    %10 = arith.addf %6, %9 : vector<8x16xf32>
    %c0_11 = arith.constant 0 : index
    %c0_12 = arith.constant 0 : index
    %c0_13 = arith.constant 0 : index
    %11 = vector.load %arg6[%c0_11, %c0_12, %c0_13] : memref<1x32x16xf32, #tpu.memory_space<vmem>>, vector<1x32x16xf32>
    %12 = vector.shape_cast %11 : vector<1x32x16xf32> to vector<32x16xf32>
    %cst_14 = arith.constant dense<0.000000e+00> : vector<8x16xf32>
    %13 = tpu.matmul %1, %12, %cst_14 {dimension_numbers = #tpu.dot_dimension_numbers<[1], [0], [0], [1], [0, 0, 1, 1], [], []>} : vector<8x32xf32>, vector<32x16xf32>, vector<8x16xf32> -> vector<8x16xf32>
    %c0_15 = arith.constant 0 : index
    %c0_16 = arith.constant 0 : index
    %c0_17 = arith.constant 0 : index
    %14 = vector.load %arg9[%c0_15, %c0_16, %c0_17] : memref<1x1x16xf32, #tpu.memory_space<vmem>>, vector<1x1x16xf32>
    %15 = vector.shape_cast %14 : vector<1x1x16xf32> to vector<1x16xf32>
    %16 = vector.broadcast %15 : vector<1x16xf32> to vector<8x16xf32>
    %17 = arith.addf %13, %16 : vector<8x16xf32>
    %c0_18 = arith.constant 0 : index
    %c0_19 = arith.constant 0 : index
    %c0_20 = arith.constant 0 : index
    %18 = vector.load %arg7[%c0_18, %c0_19, %c0_20] : memref<1x32x16xf32, #tpu.memory_space<vmem>>, vector<1x32x16xf32>
    %19 = vector.shape_cast %18 : vector<1x32x16xf32> to vector<32x16xf32>
    %cst_21 = arith.constant dense<0.000000e+00> : vector<8x16xf32>
    %20 = tpu.matmul %1, %19, %cst_21 {dimension_numbers = #tpu.dot_dimension_numbers<[1], [0], [0], [1], [0, 0, 1, 1], [], []>} : vector<8x32xf32>, vector<32x16xf32>, vector<8x16xf32> -> vector<8x16xf32>
    %c0_22 = arith.constant 0 : index
    %c0_23 = arith.constant 0 : index
    %c0_24 = arith.constant 0 : index
    %21 = vector.load %arg10[%c0_22, %c0_23, %c0_24] : memref<1x1x16xf32, #tpu.memory_space<vmem>>, vector<1x1x16xf32>
    %22 = vector.shape_cast %21 : vector<1x1x16xf32> to vector<1x16xf32>
    %23 = vector.broadcast %22 : vector<1x16xf32> to vector<8x16xf32>
    %24 = arith.addf %20, %23 : vector<8x16xf32>
    %cst_25 = arith.constant dense<0.000000e+00> : vector<8x8xf32>
    %25 = tpu.matmul %10, %17, %cst_25 {dimension_numbers = #tpu.dot_dimension_numbers<[1], [1], [0], [0], [0, 0, 1, 0], [], []>} : vector<8x16xf32>, vector<8x16xf32>, vector<8x8xf32> -> vector<8x8xf32>
    %cst_26 = arith.constant 2.500000e-01 : f32
    %26 = vector.broadcast %cst_26 : f32 to vector<8x8xf32>
    %27 = arith.mulf %25, %26 : vector<8x8xf32>
    %c0_27 = arith.constant 0 : index
    %c0_28 = arith.constant 0 : index
    %28 = vector.load %arg4[%c0_27, %c0_28] : memref<8x8xf32, #tpu.memory_space<vmem>>, vector<8x8xf32>
    %29 = arith.mulf %28, %27 : vector<8x8xf32>
    %cst_29 = arith.constant 0.000000e+00 : f32
    %30 = vector.broadcast %cst_29 : f32 to vector<8x8xf32>
    %31 = arith.cmpf one, %29, %30 : vector<8x8xf32>
    %cst_30 = arith.constant -3.000000e+38 : f32
    %32 = vector.broadcast %cst_30 : f32 to vector<8x8xf32>
    %33 = arith.select %31, %29, %32 : vector<8x8xi1>, vector<8x8xf32>
    %cst_31 = arith.constant dense<0xFF800000> : vector<8xf32>
    %34 = vector.multi_reduction <maximumf>, %33, %cst_31 [1] : vector<8x8xf32> to vector<8xf32>
    %35 = vector.shape_cast %34 : vector<8xf32> to vector<8x1xf32>
    %36 = vector.broadcast %35 : vector<8x1xf32> to vector<8x8xf32>
    %37 = arith.subf %29, %36 : vector<8x8xf32>
    %cst_32 = arith.constant -1.000000e+09 : f32
    %38 = vector.broadcast %cst_32 : f32 to vector<8x8xf32>
    %39 = arith.select %31, %37, %38 : vector<8x8xi1>, vector<8x8xf32>
    %40 = math.exp %39 : vector<8x8xf32>
    %cst_33 = arith.constant dense<0.000000e+00> : vector<8xf32>
    %41 = vector.multi_reduction <add>, %40, %cst_33 [1] : vector<8x8xf32> to vector<8xf32>
    %42 = vector.shape_cast %41 : vector<8xf32> to vector<8x1xf32>
    %cst_34 = arith.constant 0.000000e+00 : f32
    %43 = vector.broadcast %cst_34 : f32 to vector<8x1xf32>
    %44 = arith.cmpf ogt, %42, %43 : vector<8x1xf32>
    %cst_35 = arith.constant 1.000000e+00 : f32
    %45 = vector.broadcast %cst_35 : f32 to vector<8x1xf32>
    %46 = arith.select %44, %42, %45 : vector<8x1xi1>, vector<8x1xf32>
    %47 = tpu.reciprocal %46 {approx = true} : vector<8x1xf32> -> vector<8x1xf32>
    %48 = vector.broadcast %47 : vector<8x1xf32> to vector<8x8xf32>
    %49 = arith.mulf %40, %48 : vector<8x8xf32>
    %cst_36 = arith.constant dense<0.000000e+00> : vector<8x16xf32>
    %50 = tpu.matmul %49, %24, %cst_36 {dimension_numbers = #tpu.dot_dimension_numbers<[1], [0], [0], [1], [0, 0, 1, 1], [], []>} : vector<8x8xf32>, vector<8x16xf32>, vector<8x16xf32> -> vector<8x16xf32>
    %c0_i32 = arith.constant 0 : i32
    %51 = arith.cmpi eq, %arg1, %c0_i32 : i32
    %52 = arith.extui %51 : i1 to i32
    %c0_i32_37 = arith.constant 0 : i32
    %53 = arith.cmpi ne, %52, %c0_i32_37 : i32
    scf.if %53 {
      %cst_47 = arith.constant 0.000000e+00 : f32
      %63 = vector.broadcast %cst_47 : f32 to vector<8x32xf32>
      %c0_48 = arith.constant 0 : index
      %c0_49 = arith.constant 0 : index
      %64 = vector.load %arg14[%c0_48, %c0_49] : memref<8x32xf32, #tpu.memory_space<vmem>>, vector<8x32xf32>
      tpu.vector_store %arg14[%c0_48, %c0_49], %63 {strides = array<i32>} : memref<8x32xf32, #tpu.memory_space<vmem>>, vector<8x32xf32>,
    } else {
    }
    %c0_38 = arith.constant 0 : index
    %c0_39 = arith.constant 0 : index
    %54 = vector.load %arg14[%c0_38, %c0_39] : memref<8x32xf32, #tpu.memory_space<vmem>>, vector<8x32xf32>
    %c0_40 = arith.constant 0 : index
    %c0_41 = arith.constant 0 : index
    %c0_42 = arith.constant 0 : index
    %55 = vector.load %arg11[%c0_40, %c0_41, %c0_42] : memref<1x16x32xf32, #tpu.memory_space<vmem>>, vector<1x16x32xf32>
    %56 = vector.shape_cast %55 : vector<1x16x32xf32> to vector<16x32xf32>
    %cst_43 = arith.constant dense<0.000000e+00> : vector<8x32xf32>
    %57 = tpu.matmul %50, %56, %cst_43 {dimension_numbers = #tpu.dot_dimension_numbers<[1], [0], [0], [1], [0, 0, 1, 1], [], []>} : vector<8x16xf32>, vector<16x32xf32>, vector<8x32xf32> -> vector<8x32xf32>
    %58 = arith.addf %54, %57 : vector<8x32xf32>
    %c0_44 = arith.constant 0 : index
    %c0_45 = arith.constant 0 : index
    %59 = vector.load %arg14[%c0_44, %c0_45] : memref<8x32xf32, #tpu.memory_space<vmem>>, vector<8x32xf32>
    tpu.vector_store %arg14[%c0_44, %c0_45], %58 {strides = array<i32>} : memref<8x32xf32, #tpu.memory_space<vmem>>, vector<8x32xf32>,
    %c3_i32 = arith.constant 3 : i32
    %60 = arith.cmpi eq, %arg1, %c3_i32 : i32
    %61 = arith.extui %60 : i1 to i32
    %c0_i32_46 = arith.constant 0 : i32
    %62 = arith.cmpi ne, %61, %c0_i32_46 : i32
    scf.if %62 {
      %c0_47 = arith.constant 0 : index
      %c0_48 = arith.constant 0 : index
      %63 = vector.load %arg14[%c0_47, %c0_48] : memref<8x32xf32, #tpu.memory_space<vmem>>, vector<8x32xf32>
      %c0_49 = arith.constant 0 : index
      %c0_50 = arith.constant 0 : index
      %64 = vector.load %arg12[%c0_49, %c0_50] : memref<1x32xf32, #tpu.memory_space<vmem>>, vector<1x32xf32>
      %65 = vector.broadcast %64 : vector<1x32xf32> to vector<8x32xf32>
      %66 = arith.addf %63, %65 : vector<8x32xf32>
      %c0_51 = arith.constant 0 : index
      %c0_52 = arith.constant 0 : index
      %c0_53 = arith.constant 0 : index
      %67 = vector.load %arg13[%c0_51, %c0_52, %c0_53] : memref<1x8x32xf32, #tpu.memory_space<vmem>>, vector<1x8x32xf32>
      %68 = vector.shape_cast %67 : vector<1x8x32xf32> to vector<8x32xf32>
      %69 = vector.shape_cast %66 : vector<8x32xf32> to vector<1x8x32xf32>
      tpu.vector_store %arg13[%c0_51, %c0_52, %c0_53], %69 {strides = array<i32>} : memref<1x8x32xf32, #tpu.memory_space<vmem>>, vector<1x8x32xf32>,
    } else {
    }
    return
  }
  func.func @transform_0(%arg0: i32, %arg1: i32) -> (i32, i32, i32) {
    %c0_i32 = arith.constant 0 : i32
    %c0_i32_0 = arith.constant 0 : i32
    %c0_i32_1 = arith.constant 0 : i32
    return %arg0, %c0_i32, %c0_i32_0 : i32, i32, i32
  }
  func.func @transform_1(%arg0: i32, %arg1: i32) -> (i32, i32, i32) {
    %c0_i32 = arith.constant 0 : i32
    %c0_i32_0 = arith.constant 0 : i32
    %c0_i32_1 = arith.constant 0 : i32
    return %arg0, %c0_i32, %c0_i32_0 : i32, i32, i32
  }
  func.func @transform_2(%arg0: i32, %arg1: i32) -> (i32, i32) {
    %c0_i32 = arith.constant 0 : i32
    %c0_i32_0 = arith.constant 0 : i32
    %c0_i32_1 = arith.constant 0 : i32
    return %c0_i32, %c0_i32_0 : i32, i32
  }
  func.func @transform_3(%arg0: i32, %arg1: i32) -> (i32, i32, i32) {
    %c0_i32 = arith.constant 0 : i32
    %c0_i32_0 = arith.constant 0 : i32
    %c0_i32_1 = arith.constant 0 : i32
    return %arg1, %c0_i32, %c0_i32_0 : i32, i32, i32
  }
  func.func @transform_4(%arg0: i32, %arg1: i32) -> (i32, i32, i32) {
    %c0_i32 = arith.constant 0 : i32
    %c0_i32_0 = arith.constant 0 : i32
    %c0_i32_1 = arith.constant 0 : i32
    return %arg1, %c0_i32, %c0_i32_0 : i32, i32, i32
  }
  func.func @transform_5(%arg0: i32, %arg1: i32) -> (i32, i32, i32) {
    %c0_i32 = arith.constant 0 : i32
    %c0_i32_0 = arith.constant 0 : i32
    %c0_i32_1 = arith.constant 0 : i32
    return %arg1, %c0_i32, %c0_i32_0 : i32, i32, i32
  }
  func.func @transform_6(%arg0: i32, %arg1: i32) -> (i32, i32, i32) {
    %c0_i32 = arith.constant 0 : i32
    %c0_i32_0 = arith.constant 0 : i32
    %c0_i32_1 = arith.constant 0 : i32
    return %arg1, %c0_i32, %c0_i32_0 : i32, i32, i32
  }
  func.func @transform_7(%arg0: i32, %arg1: i32) -> (i32, i32, i32) {
    %c0_i32 = arith.constant 0 : i32
    %c0_i32_0 = arith.constant 0 : i32
    %c0_i32_1 = arith.constant 0 : i32
    return %arg1, %c0_i32, %c0_i32_0 : i32, i32, i32
  }
  func.func @transform_8(%arg0: i32, %arg1: i32) -> (i32, i32, i32) {
    %c0_i32 = arith.constant 0 : i32
    %c0_i32_0 = arith.constant 0 : i32
    %c0_i32_1 = arith.constant 0 : i32
    return %arg1, %c0_i32, %c0_i32_0 : i32, i32, i32
  }
  func.func @transform_9(%arg0: i32, %arg1: i32) -> (i32, i32, i32) {
    %c0_i32 = arith.constant 0 : i32
    %c0_i32_0 = arith.constant 0 : i32
    %c0_i32_1 = arith.constant 0 : i32
    return %arg1, %c0_i32, %c0_i32_0 : i32, i32, i32
  }
  func.func @transform_10(%arg0: i32, %arg1: i32) -> (i32, i32) {
    %c0_i32 = arith.constant 0 : i32
    %c0_i32_0 = arith.constant 0 : i32
    %c0_i32_1 = arith.constant 0 : i32
    return %c0_i32, %c0_i32_0 : i32, i32
  }
  func.func @transform_11(%arg0: i32, %arg1: i32) -> (i32, i32, i32) {
    %c0_i32 = arith.constant 0 : i32
    %c0_i32_0 = arith.constant 0 : i32
    %c0_i32_1 = arith.constant 0 : i32
    return %arg0, %c0_i32, %c0_i32_0 : i32, i32, i32
  }
}

</mosaic_0001>

<llo_original>
// kernel: tpu_custom_call.1
$region0: #{tpu_custom_call.1}
  #allocation0 [shape = 'u32[]', space=smem, size = 0x4, offset = 0x4, fixed_abs, tag = 'smem constant byte address 0x4 - core index']
  #allocation1 [shape = 'u32[144,128]{1,0:T(1,128)}', space=vmem, size = 0x12000, scoped, tag = 'internal scratch']
  #allocation2 [shape = 'f32[8,32]{1,0:T(8,128)}', space=vmem, size = 0x1000, scoped, tag = 'scratch operand']
  %s0 = inlined_call_operand.vmem [shape: f32[2,8,32], index: 0, kind: input, shape index: {}]
  %s1 = inlined_call_operand.vmem [shape: f32[2,8,32], index: 1, kind: input, shape index: {}]
  %s2 = inlined_call_operand.vmem [shape: f32[8,8], index: 2, kind: input, shape index: {}]
  %s3 = inlined_call_operand.vmem [shape: f32[4,32,16], index: 3, kind: input, shape index: {}]
  %s4 = inlined_call_operand.vmem [shape: f32[4,32,16], index: 4, kind: input, shape index: {}]
  %s5 = inlined_call_operand.vmem [shape: f32[4,32,16], index: 5, kind: input, shape index: {}]
  %s6 = inlined_call_operand.vmem [shape: f32[4,1,16], index: 6, kind: input, shape index: {}]
  %s7 = inlined_call_operand.vmem [shape: f32[4,1,16], index: 7, kind: input, shape index: {}]
  %s8 = inlined_call_operand.vmem [shape: f32[4,1,16], index: 8, kind: input, shape index: {}]
  %s9 = inlined_call_operand.vmem [shape: f32[4,16,32], index: 9, kind: input, shape index: {}]
  %s10 = inlined_call_operand.vmem [shape: f32[1,32], index: 10, kind: input, shape index: {}]
  %s11 = inlined_call_operand.hbm [shape: f32[2,8,32], index: 11, kind: output, shape index: {}]
  %s12 = sld [smem:[#allocation0]]
  $region85: #{tpu_custom_call.1} parent=0
    _
  %s14 = ssub.s32 1, %s12
  %s15 = scalar_select 0, %s14, %s12
  $region1: #{tpu_custom_call.1} parent=0
    #allocation3 [shape = 'u8[8192]{0}', space=vmem, size = 0x2000, scoped, tag = 'output window, operand 0']
    #allocation4 [shape = 's32[2]{0}', space=sflag, size = 0x8, scoped, tag = 'scoped memory for tpu_custom_call.1']
    %16 = vsyncpa [#allocation4], 0
    %s17 = scalar_lea.sflag [#allocation4], 1
    %18 = vsyncpa %s17, 0
    loop: start=0, step=1, limit=10
    $region2: #{tpu_custom_call.1} parent=1 // loop_pre_header
      _
    $region3: #{tpu_custom_call.1} parent=1 // loop_header
      %s20 = sphi 0, %s24
      %p21 = scmp.ge.s32.totalorder %s20, 10
      %s27 = sphi 0, %s39
      %s28 = sphi 0, %s35
      %s29 = sphi 0, %s27
      %s30 = sphi 0, %s28
      %s31 = sphi 0, %s29
      %s32 = sphi 0, %s30
      %s42 = sphi 0, %s44
      %s45 = sphi 0, %s42
      %s46 = sphi 0, %s45
      %s62 = sphi 0, %s46
      %s68 = sphi 0, %s70
      %s71 = sphi 0, %s68
      %s72 = sphi 0, %s71
      %s88 = sphi 0, %s72
      %s92 = sphi 0, %s92
      %s94 = sphi 0, %s92
      %s95 = sphi 0, %s94
      %s109 = sphi 0, %s95
      %s115 = sphi 0, %s117
      %s118 = sphi 0, %s115
      %s119 = sphi 0, %s118
      %s135 = sphi 0, %s119
      %s141 = sphi 0, %s143
      %s144 = sphi 0, %s141
      %s145 = sphi 0, %s144
      %s161 = sphi 0, %s145
      %s167 = sphi 0, %s169
      %s170 = sphi 0, %s167
      %s171 = sphi 0, %s170
      %s187 = sphi 0, %s171
      %s193 = sphi 0, %s195
      %s196 = sphi 0, %s193
      %s197 = sphi 0, %s196
      %s213 = sphi 0, %s197
      %s219 = sphi 0, %s221
      %s222 = sphi 0, %s219
      %s223 = sphi 0, %s222
      %s239 = sphi 0, %s223
      %s245 = sphi 0, %s247
      %s248 = sphi 0, %s245
      %s249 = sphi 0, %s248
      %s265 = sphi 0, %s249
      %s271 = sphi 0, %s273
      %s274 = sphi 0, %s271
      %s275 = sphi 0, %s274
      %s291 = sphi 0, %s275
      %s295 = sphi 0, %s295
      %s297 = sphi 0, %s295
      %s298 = sphi 0, %s297
      %s312 = sphi 0, %s298
      %s318 = sphi 0, %s320
      %s321 = sphi 0, %s318
      %s322 = sphi 0, %s321
      %s338 = sphi 0, %s322
    $region4: #{tpu_custom_call.1} parent=1 // loop_header_branch
      %23 = sbr.rel (%p21) target = $region8
    $region5: #{tpu_custom_call.1} parent=1 // loop_body
      %s25 = ssub.s32 %s20, 1
      %s26 = ssub.s32 %s20, 2
      %s33 = sadd.s32 1, %s28
      %p34 = scmp.ge.s32.totalorder %s33, 4
      %s35 = scalar_select %p34, 0, %s33
      %s36 = sadd.s32 1, %s27
      %s37 = scalar_select %p34, %s36, %s27
      %p38 = scmp.ge.s32.totalorder %s37, 2
      %s39 = scalar_select %p38, 0, %s37
      %s40 = ssub.s32 %s27, %s39
      %p41 = scmp.eq.s32.totalorder %s40, 0
      %s43 = sadd.s32 %s42, 1
      %s44 = scalar_select %p41, %s42, %s43
      %p47 = pneg %p41
      %p48 = scmp.eq.s32.totalorder %s20, 7
      %p49 = por %p47, %p48
      %p50 = scmp.ne.s32.totalorder %s42, %s45
      %p51 = scmp.eq.s32.totalorder %s20, 0
      %p52 = por %p50, %p51
      %p53 = scmp.ne.s32.totalorder %s42, %s45
      %p54 = scmp.eq.s32.totalorder %s25, 7
      %p55 = por %p53, %p54
      %p56 = scmp.ne.s32.totalorder %s45, %s46
      %p57 = scmp.eq.s32.totalorder %s25, 0
      %p58 = por %p56, %p57
      %p59 = scmp.ne.s32.totalorder %s45, %s46
      %p60 = scmp.eq.s32.totalorder %s26, 7
      %p61 = por %p59, %p60
      %p63 = scmp.ne.s32.totalorder %s46, %s62
      %p64 = scmp.eq.s32.totalorder %s26, 0
      %p65 = por %p63, %p64
      %s66 = ssub.s32 %s27, %s39
      %p67 = scmp.eq.s32.totalorder %s66, 0
      %s69 = sadd.s32 %s68, 1
      %s70 = scalar_select %p67, %s68, %s69
      %p73 = pneg %p67
      %p74 = scmp.eq.s32.totalorder %s20, 7
      %p75 = por %p73, %p74
      %p76 = scmp.ne.s32.totalorder %s68, %s71
      %p77 = scmp.eq.s32.totalorder %s20, 0
      %p78 = por %p76, %p77
      %p79 = scmp.ne.s32.totalorder %s68, %s71
      %p80 = scmp.eq.s32.totalorder %s25, 7
      %p81 = por %p79, %p80
      %p82 = scmp.ne.s32.totalorder %s71, %s72
      %p83 = scmp.eq.s32.totalorder %s25, 0
      %p84 = por %p82, %p83
      %p85 = scmp.ne.s32.totalorder %s71, %s72
      %p86 = scmp.eq.s32.totalorder %s26, 7
      %p87 = por %p85, %p86
      %p89 = scmp.ne.s32.totalorder %s72, %s88
      %p90 = scmp.eq.s32.totalorder %s26, 0
      %p91 = por %p89, %p90
      %s93 = sadd.s32 %s92, 1
      %p96 = scmp.eq.s32.totalorder %s20, 7
      %p97 = scmp.ne.s32.totalorder %s92, %s94
      %p98 = scmp.eq.s32.totalorder %s20, 0
      %p99 = por %p97, %p98
      %p100 = scmp.ne.s32.totalorder %s92, %s94
      %p101 = scmp.eq.s32.totalorder %s25, 7
      %p102 = por %p100, %p101
      %p103 = scmp.ne.s32.totalorder %s94, %s95
      %p104 = scmp.eq.s32.totalorder %s25, 0
      %p105 = por %p103, %p104
      %p106 = scmp.ne.s32.totalorder %s94, %s95
      %p107 = scmp.eq.s32.totalorder %s26, 7
      %p108 = por %p106, %p107
      %p110 = scmp.ne.s32.totalorder %s95, %s109
      %p111 = scmp.eq.s32.totalorder %s26, 0
      %p112 = por %p110, %p111
      %s113 = ssub.s32 %s28, %s35
      %p114 = scmp.eq.s32.totalorder %s113, 0
      %s116 = sadd.s32 %s115, 1
      %s117 = scalar_select %p114, %s115, %s116
      %p120 = pneg %p114
      %p121 = scmp.eq.s32.totalorder %s20, 7
      %p122 = por %p120, %p121
      %p123 = scmp.ne.s32.totalorder %s115, %s118
      %p124 = scmp.eq.s32.totalorder %s20, 0
      %p125 = por %p123, %p124
      %p126 = scmp.ne.s32.totalorder %s115, %s118
      %p127 = scmp.eq.s32.totalorder %s25, 7
      %p128 = por %p126, %p127
      %p129 = scmp.ne.s32.totalorder %s118, %s119
      %p130 = scmp.eq.s32.totalorder %s25, 0
      %p131 = por %p129, %p130
      %p132 = scmp.ne.s32.totalorder %s118, %s119
      %p133 = scmp.eq.s32.totalorder %s26, 7
      %p134 = por %p132, %p133
      %p136 = scmp.ne.s32.totalorder %s119, %s135
      %p137 = scmp.eq.s32.totalorder %s26, 0
      %p138 = por %p136, %p137
      %s139 = ssub.s32 %s28, %s35
      %p140 = scmp.eq.s32.totalorder %s139, 0
      %s142 = sadd.s32 %s141, 1
      %s143 = scalar_select %p140, %s141, %s142
      %p146 = pneg %p140
      %p147 = scmp.eq.s32.totalorder %s20, 7
      %p148 = por %p146, %p147
      %p149 = scmp.ne.s32.totalorder %s141, %s144
      %p150 = scmp.eq.s32.totalorder %s20, 0
      %p151 = por %p149, %p150
      %p152 = scmp.ne.s32.totalorder %s141, %s144
      %p153 = scmp.eq.s32.totalorder %s25, 7
      %p154 = por %p152, %p153
      %p155 = scmp.ne.s32.totalorder %s144, %s145
      %p156 = scmp.eq.s32.totalorder %s25, 0
      %p157 = por %p155, %p156
      %p158 = scmp.ne.s32.totalorder %s144, %s145
      %p159 = scmp.eq.s32.totalorder %s26, 7
      %p160 = por %p158, %p159
      %p162 = scmp.ne.s32.totalorder %s145, %s161
      %p163 = scmp.eq.s32.totalorder %s26, 0
      %p164 = por %p162, %p163
      %s165 = ssub.s32 %s28, %s35
      %p166 = scmp.eq.s32.totalorder %s165, 0
      %s168 = sadd.s32 %s167, 1
      %s169 = scalar_select %p166, %s167, %s168
      %p172 = pneg %p166
      %p173 = scmp.eq.s32.totalorder %s20, 7
      %p174 = por %p172, %p173
      %p175 = scmp.ne.s32.totalorder %s167, %s170
      %p176 = scmp.eq.s32.totalorder %s20, 0
      %p177 = por %p175, %p176
      %p178 = scmp.ne.s32.totalorder %s167, %s170
      %p179 = scmp.eq.s32.totalorder %s25, 7
      %p180 = por %p178, %p179
      %p181 = scmp.ne.s32.totalorder %s170, %s171
      %p182 = scmp.eq.s32.totalorder %s25, 0
      %p183 = por %p181, %p182
      %p184 = scmp.ne.s32.totalorder %s170, %s171
      %p185 = scmp.eq.s32.totalorder %s26, 7
      %p186 = por %p184, %p185
      %p188 = scmp.ne.s32.totalorder %s171, %s187
      %p189 = scmp.eq.s32.totalorder %s26, 0
      %p190 = por %p188, %p189
      %s191 = ssub.s32 %s28, %s35
      %p192 = scmp.eq.s32.totalorder %s191, 0
      %s194 = sadd.s32 %s193, 1
      %s195 = scalar_select %p192, %s193, %s194
      %p198 = pneg %p192
      %p199 = scmp.eq.s32.totalorder %s20, 7
      %p200 = por %p198, %p199
      %p201 = scmp.ne.s32.totalorder %s193, %s196
      %p202 = scmp.eq.s32.totalorder %s20, 0
      %p203 = por %p201, %p202
      %p204 = scmp.ne.s32.totalorder %s193, %s196
      %p205 = scmp.eq.s32.totalorder %s25, 7
      %p206 = por %p204, %p205
      %p207 = scmp.ne.s32.totalorder %s196, %s197
      %p208 = scmp.eq.s32.totalorder %s25, 0
      %p209 = por %p207, %p208
      %p210 = scmp.ne.s32.totalorder %s196, %s197
      %p211 = scmp.eq.s32.totalorder %s26, 7
      %p212 = por %p210, %p211
      %p214 = scmp.ne.s32.totalorder %s197, %s213
      %p215 = scmp.eq.s32.totalorder %s26, 0
      %p216 = por %p214, %p215
      %s217 = ssub.s32 %s28, %s35
      %p218 = scmp.eq.s32.totalorder %s217, 0
      %s220 = sadd.s32 %s219, 1
      %s221 = scalar_select %p218, %s219, %s220
      %p224 = pneg %p218
      %p225 = scmp.eq.s32.totalorder %s20, 7
      %p226 = por %p224, %p225
      %p227 = scmp.ne.s32.totalorder %s219, %s222
      %p228 = scmp.eq.s32.totalorder %s20, 0
      %p229 = por %p227, %p228
      %p230 = scmp.ne.s32.totalorder %s219, %s222
      %p231 = scmp.eq.s32.totalorder %s25, 7
      %p232 = por %p230, %p231
      %p233 = scmp.ne.s32.totalorder %s222, %s223
      %p234 = scmp.eq.s32.totalorder %s25, 0
      %p235 = por %p233, %p234
      %p236 = scmp.ne.s32.totalorder %s222, %s223
      %p237 = scmp.eq.s32.totalorder %s26, 7
      %p238 = por %p236, %p237
      %p240 = scmp.ne.s32.totalorder %s223, %s239
      %p241 = scmp.eq.s32.totalorder %s26, 0
      %p242 = por %p240, %p241
      %s243 = ssub.s32 %s28, %s35
      %p244 = scmp.eq.s32.totalorder %s243, 0
      %s246 = sadd.s32 %s245, 1
      %s247 = scalar_select %p244, %s245, %s246
      %p250 = pneg %p244
      %p251 = scmp.eq.s32.totalorder %s20, 7
      %p252 = por %p250, %p251
      %p253 = scmp.ne.s32.totalorder %s245, %s248
      %p254 = scmp.eq.s32.totalorder %s20, 0
      %p255 = por %p253, %p254
      %p256 = scmp.ne.s32.totalorder %s245, %s248
      %p257 = scmp.eq.s32.totalorder %s25, 7
      %p258 = por %p256, %p257
      %p259 = scmp.ne.s32.totalorder %s248, %s249
      %p260 = scmp.eq.s32.totalorder %s25, 0
      %p261 = por %p259, %p260
      %p262 = scmp.ne.s32.totalorder %s248, %s249
      %p263 = scmp.eq.s32.totalorder %s26, 7
      %p264 = por %p262, %p263
      %p266 = scmp.ne.s32.totalorder %s249, %s265
      %p267 = scmp.eq.s32.totalorder %s26, 0
      %p268 = por %p266, %p267
      %s269 = ssub.s32 %s28, %s35
      %p270 = scmp.eq.s32.totalorder %s269, 0
      %s272 = sadd.s32 %s271, 1
      %s273 = scalar_select %p270, %s271, %s272
      %p276 = pneg %p270
      %p277 = scmp.eq.s32.totalorder %s20, 7
      %p278 = por %p276, %p277
      %p279 = scmp.ne.s32.totalorder %s271, %s274
      %p280 = scmp.eq.s32.totalorder %s20, 0
      %p281 = por %p279, %p280
      %p282 = scmp.ne.s32.totalorder %s271, %s274
      %p283 = scmp.eq.s32.totalorder %s25, 7
      %p284 = por %p282, %p283
      %p285 = scmp.ne.s32.totalorder %s274, %s275
      %p286 = scmp.eq.s32.totalorder %s25, 0
      %p287 = por %p285, %p286
      %p288 = scmp.ne.s32.totalorder %s274, %s275
      %p289 = scmp.eq.s32.totalorder %s26, 7
      %p290 = por %p288, %p289
      %p292 = scmp.ne.s32.totalorder %s275, %s291
      %p293 = scmp.eq.s32.totalorder %s26, 0
      %p294 = por %p292, %p293
      %s296 = sadd.s32 %s295, 1
      %p299 = scmp.eq.s32.totalorder %s20, 7
      %p300 = scmp.ne.s32.totalorder %s295, %s297
      %p301 = scmp.eq.s32.totalorder %s20, 0
      %p302 = por %p300, %p301
      %p303 = scmp.ne.s32.totalorder %s295, %s297
      %p304 = scmp.eq.s32.totalorder %s25, 7
      %p305 = por %p303, %p304
      %p306 = scmp.ne.s32.totalorder %s297, %s298
      %p307 = scmp.eq.s32.totalorder %s25, 0
      %p308 = por %p306, %p307
      %p309 = scmp.ne.s32.totalorder %s297, %s298
      %p310 = scmp.eq.s32.totalorder %s26, 7
      %p311 = por %p309, %p310
      %p313 = scmp.ne.s32.totalorder %s298, %s312
      %p314 = scmp.eq.s32.totalorder %s26, 0
      %p315 = por %p313, %p314
      %s316 = ssub.s32 %s27, %s39
      %p317 = scmp.eq.s32.totalorder %s316, 0
      %s319 = sadd.s32 %s318, 1
      %s320 = scalar_select %p317, %s318, %s319
      %p323 = pneg %p317
      %p324 = scmp.eq.s32.totalorder %s20, 7
      %p325 = por %p323, %p324
      %p326 = scmp.ne.s32.totalorder %s318, %s321
      %p327 = scmp.eq.s32.totalorder %s20, 0
      %p328 = por %p326, %p327
      %p329 = scmp.ne.s32.totalorder %s318, %s321
      %p330 = scmp.eq.s32.totalorder %s25, 7
      %p331 = por %p329, %p330
      %p332 = scmp.ne.s32.totalorder %s321, %s322
      %p333 = scmp.eq.s32.totalorder %s25, 0
      %p334 = por %p332, %p333
      %p335 = scmp.ne.s32.totalorder %s321, %s322
      %p336 = scmp.eq.s32.totalorder %s26, 7
      %p337 = por %p335, %p336
      %p339 = scmp.ne.s32.totalorder %s322, %s338
      %p340 = scmp.eq.s32.totalorder %s26, 0
      %p341 = por %p339, %p340
      %p342 = scmp.le.s32.totalorder 1, %s20
      %p343 = scmp.lt.s32.totalorder %s20, 9
      %p344 = pnand %p342, %p343
      %p345 = pneg %p344
      // Predicated region
      $region9: #{tpu_custom_call.1} parent=5 // pred_check
        _
      $region10: #{tpu_custom_call.1} parent=5 // pred_check_branch
        %347 = sbr.rel (%p344) target = $region12
      $region11: #{tpu_custom_call.1} parent=5 // pred_region
        %s348 = ssub.s32 %s20, 1
        // Predicated region
        $region13: #{tpu_custom_call.1} parent=11 // pred_check
          %p349 = pneg %p105
        $region14: #{tpu_custom_call.1} parent=11 // pred_check_branch
          %351 = sbr.rel (%p349) target = $region16
        $region15: #{tpu_custom_call.1} parent=11 // pred_region
          _
        $region16: #{tpu_custom_call.1} parent=11 // pred_fallthru
          _
        // Predicated region
        $region17: #{tpu_custom_call.1} parent=11 // pred_check
          %p352 = pneg %p308
        $region18: #{tpu_custom_call.1} parent=11 // pred_check_branch
          %354 = sbr.rel (%p352) target = $region20
        $region19: #{tpu_custom_call.1} parent=11 // pred_region
          _
        $region20: #{tpu_custom_call.1} parent=11 // pred_fallthru
          _
      $region12: #{tpu_custom_call.1} parent=5 // pred_fallthru
        _
      %p355 = scmp.lt.s32.totalorder %s20, 8
      // Predicated region
      $region21: #{tpu_custom_call.1} parent=5 // pred_check
        %p356 = pneg %p355
      $region22: #{tpu_custom_call.1} parent=5 // pred_check_branch
        %358 = sbr.rel (%p356) target = $region24
      $region23: #{tpu_custom_call.1} parent=5 // pred_region
        // Predicated region
        $region25: #{tpu_custom_call.1} parent=23 // pred_check
          %p359 = pneg %p52
        $region26: #{tpu_custom_call.1} parent=23 // pred_check_branch
          %361 = sbr.rel (%p359) target = $region28
        $region27: #{tpu_custom_call.1} parent=23 // pred_region
          %p362 = scmp.lt.s32.totalorder %s27, 1
          %s363 = scalar_select %p362, %s27, 1
          %s364 = smul.addr %s363, 8
          %s365 = scalar_lea.vmem %s0, %s364
        $region28: #{tpu_custom_call.1} parent=23 // pred_fallthru
          _
        // Predicated region
        $region29: #{tpu_custom_call.1} parent=23 // pred_check
          %p366 = pneg %p78
        $region30: #{tpu_custom_call.1} parent=23 // pred_check_branch
          %368 = sbr.rel (%p366) target = $region32
        $region31: #{tpu_custom_call.1} parent=23 // pred_region
          %p369 = scmp.lt.s32.totalorder %s27, 1
          %s370 = scalar_select %p369, %s27, 1
          %s371 = smul.addr %s370, 8
          %s372 = scalar_lea.vmem %s1, %s371
        $region32: #{tpu_custom_call.1} parent=23 // pred_fallthru
          _
        // Predicated region
        $region33: #{tpu_custom_call.1} parent=23 // pred_check
          %p373 = pneg %p125
        $region34: #{tpu_custom_call.1} parent=23 // pred_check_branch
          %375 = sbr.rel (%p373) target = $region36
        $region35: #{tpu_custom_call.1} parent=23 // pred_region
          %p376 = scmp.lt.s32.totalorder %s28, 3
          %s377 = scalar_select %p376, %s28, 3
          %s378 = smul.addr %s377, 4
          %s379 = smul.addr %s378, 8
          %s380 = scalar_lea.vmem %s3, %s379
        $region36: #{tpu_custom_call.1} parent=23 // pred_fallthru
          _
        // Predicated region
        $region37: #{tpu_custom_call.1} parent=23 // pred_check
          %p381 = pneg %p151
        $region38: #{tpu_custom_call.1} parent=23 // pred_check_branch
          %383 = sbr.rel (%p381) target = $region40
        $region39: #{tpu_custom_call.1} parent=23 // pred_region
          %p384 = scmp.lt.s32.totalorder %s28, 3
          %s385 = scalar_select %p384, %s28, 3
          %s386 = smul.addr %s385, 4
          %s387 = smul.addr %s386, 8
          %s388 = scalar_lea.vmem %s4, %s387
        $region40: #{tpu_custom_call.1} parent=23 // pred_fallthru
          _
        // Predicated region
        $region41: #{tpu_custom_call.1} parent=23 // pred_check
          %p389 = pneg %p177
        $region42: #{tpu_custom_call.1} parent=23 // pred_check_branch
          %391 = sbr.rel (%p389) target = $region44
        $region43: #{tpu_custom_call.1} parent=23 // pred_region
          %p392 = scmp.lt.s32.totalorder %s28, 3
          %s393 = scalar_select %p392, %s28, 3
          %s394 = smul.addr %s393, 4
          %s395 = smul.addr %s394, 8
          %s396 = scalar_lea.vmem %s5, %s395
        $region44: #{tpu_custom_call.1} parent=23 // pred_fallthru
          _
        // Predicated region
        $region45: #{tpu_custom_call.1} parent=23 // pred_check
          %p397 = pneg %p203
        $region46: #{tpu_custom_call.1} parent=23 // pred_check_branch
          %399 = sbr.rel (%p397) target = $region48
        $region47: #{tpu_custom_call.1} parent=23 // pred_region
          %p400 = scmp.lt.s32.totalorder %s28, 3
          %s401 = scalar_select %p400, %s28, 3
          %s402 = scalar_lea.vmem %s6, %s401
        $region48: #{tpu_custom_call.1} parent=23 // pred_fallthru
          _
        // Predicated region
        $region49: #{tpu_custom_call.1} parent=23 // pred_check
          %p403 = pneg %p229
        $region50: #{tpu_custom_call.1} parent=23 // pred_check_branch
          %405 = sbr.rel (%p403) target = $region52
        $region51: #{tpu_custom_call.1} parent=23 // pred_region
          %p406 = scmp.lt.s32.totalorder %s28, 3
          %s407 = scalar_select %p406, %s28, 3
          %s408 = scalar_lea.vmem %s7, %s407
        $region52: #{tpu_custom_call.1} parent=23 // pred_fallthru
          _
        // Predicated region
        $region53: #{tpu_custom_call.1} parent=23 // pred_check
          %p409 = pneg %p255
        $region54: #{tpu_custom_call.1} parent=23 // pred_check_branch
          %411 = sbr.rel (%p409) target = $region56
        $region55: #{tpu_custom_call.1} parent=23 // pred_region
          %p412 = scmp.lt.s32.totalorder %s28, 3
          %s413 = scalar_select %p412, %s28, 3
          %s414 = scalar_lea.vmem %s8, %s413
        $region56: #{tpu_custom_call.1} parent=23 // pred_fallthru
          _
        // Predicated region
        $region57: #{tpu_custom_call.1} parent=23 // pred_check
          %p415 = pneg %p281
        $region58: #{tpu_custom_call.1} parent=23 // pred_check_branch
          %417 = sbr.rel (%p415) target = $region60
        $region59: #{tpu_custom_call.1} parent=23 // pred_region
          %p418 = scmp.lt.s32.totalorder %s28, 3
          %s419 = scalar_select %p418, %s28, 3
          %s420 = smul.addr %s419, 2
          %s421 = smul.addr %s420, 8
          %s422 = scalar_lea.vmem %s9, %s421
        $region60: #{tpu_custom_call.1} parent=23 // pred_fallthru
          _
      $region24: #{tpu_custom_call.1} parent=5 // pred_fallthru
        _
      %p423 = scmp.le.s32.totalorder 1, %s20
      %p424 = scmp.lt.s32.totalorder %s20, 9
      %p425 = pnand %p423, %p424
      %p426 = pneg %p425
      // Predicated region
      $region61: #{tpu_custom_call.1} parent=5 // pred_check
        _
      $region62: #{tpu_custom_call.1} parent=5 // pred_check_branch
        %428 = sbr.rel (%p425) target = $region64
      $region63: #{tpu_custom_call.1} parent=5 // pred_region
        %s429 = ssub.s32 %s20, 1
        %p430 = scmp.lt.s32.totalorder %s29, 1
        %s431 = scalar_select %p430, %s29, 1
        %s432 = smul.addr %s431, 8
        %s433 = scalar_lea.vmem %s0, %s432
        %p434 = pneg %p58
        %p435 = pneg %p55
        %p436 = scmp.lt.s32.totalorder %s29, 1
        %s437 = scalar_select %p436, %s29, 1
        %s438 = smul.addr %s437, 8
        %s439 = scalar_lea.vmem %s1, %s438
        %p440 = pneg %p84
        %p441 = pneg %p81
        %p442 = pneg %p105
        %p443 = pneg %p102
        %p444 = scmp.lt.s32.totalorder %s30, 3
        %s445 = scalar_select %p444, %s30, 3
        %s446 = smul.addr %s445, 4
        %s447 = smul.addr %s446, 8
        %s448 = scalar_lea.vmem %s3, %s447
        %p449 = pneg %p131
        %p450 = pneg %p128
        %p451 = scmp.lt.s32.totalorder %s30, 3
        %s452 = scalar_select %p451, %s30, 3
        %s453 = smul.addr %s452, 4
        %s454 = smul.addr %s453, 8
        %s455 = scalar_lea.vmem %s4, %s454
        %p456 = pneg %p157
        %p457 = pneg %p154
        %p458 = scmp.lt.s32.totalorder %s30, 3
        %s459 = scalar_select %p458, %s30, 3
        %s460 = smul.addr %s459, 4
        %s461 = smul.addr %s460, 8
        %s462 = scalar_lea.vmem %s5, %s461
        %p463 = pneg %p183
        %p464 = pneg %p180
        %p465 = scmp.lt.s32.totalorder %s30, 3
        %s466 = scalar_select %p465, %s30, 3
        %s467 = scalar_lea.vmem %s6, %s466
        %p468 = pneg %p209
        %p469 = pneg %p206
        %p470 = scmp.lt.s32.totalorder %s30, 3
        %s471 = scalar_select %p470, %s30, 3
        %s472 = scalar_lea.vmem %s7, %s471
        %p473 = pneg %p235
        %p474 = pneg %p232
        %p475 = scmp.lt.s32.totalorder %s30, 3
        %s476 = scalar_select %p475, %s30, 3
        %s477 = scalar_lea.vmem %s8, %s476
        %p478 = pneg %p261
        %p479 = pneg %p258
        %p480 = scmp.lt.s32.totalorder %s30, 3
        %s481 = scalar_select %p480, %s30, 3
        %s482 = smul.addr %s481, 2
        %s483 = smul.addr %s482, 8
        %s484 = scalar_lea.vmem %s9, %s483
        %p485 = pneg %p287
        %p486 = pneg %p284
        %p487 = pneg %p308
        %p488 = pneg %p305
        %p489 = pneg %p334
        %p490 = pneg %p331
        %s491 = sand.u32 %s321, 1
        %s492 = scalar_lea.sflag [#allocation4], %s491
        %s493 = sand.u32 %s321, 1
        %s494 = smul.addr %s493, 8
        %s495 = scalar_lea.vmem [#allocation3], %s494
        %p496 = scmp.lt.s32.totalorder %s29, 1
        %s497 = scalar_select %p496, %s29, 1
        %s498 = smul.addr %s497, 8
        %s499 = scalar_lea.vmem %s0, %s498
        %p500 = scmp.lt.s32.totalorder %s29, 1
        %s501 = scalar_select %p500, %s29, 1
        %s502 = smul.addr %s501, 8
        %s503 = scalar_lea.vmem %s1, %s502
        %p504 = scmp.lt.s32.totalorder %s30, 3
        %s505 = scalar_select %p504, %s30, 3
        %s506 = smul.addr %s505, 4
        %s507 = smul.addr %s506, 8
        %s508 = scalar_lea.vmem %s3, %s507
        %p509 = scmp.lt.s32.totalorder %s30, 3
        %s510 = scalar_select %p509, %s30, 3
        %s511 = smul.addr %s510, 4
        %s512 = smul.addr %s511, 8
        %s513 = scalar_lea.vmem %s4, %s512
        %p514 = scmp.lt.s32.totalorder %s30, 3
        %s515 = scalar_select %p514, %s30, 3
        %s516 = smul.addr %s515, 4
        %s517 = smul.addr %s516, 8
        %s518 = scalar_lea.vmem %s5, %s517
        %p519 = scmp.lt.s32.totalorder %s30, 3
        %s520 = scalar_select %p519, %s30, 3
        %s521 = scalar_lea.vmem %s6, %s520
        %p522 = scmp.lt.s32.totalorder %s30, 3
        %s523 = scalar_select %p522, %s30, 3
        %s524 = scalar_lea.vmem %s7, %s523
        %p525 = scmp.lt.s32.totalorder %s30, 3
        %s526 = scalar_select %p525, %s30, 3
        %s527 = scalar_lea.vmem %s8, %s526
        %p528 = scmp.lt.s32.totalorder %s30, 3
        %s529 = scalar_select %p528, %s30, 3
        %s530 = smul.addr %s529, 2
        %s531 = smul.addr %s530, 8
        %s532 = scalar_lea.vmem %s9, %s531
        %v533 = vld [vmem:[%s499] sm:$0xff]
        %v534 = vld [vmem:[%s503] sm:$0xff]
        %v535 = vld [vmem:[%s508] sm:$0xff]
        %v536 = vld [vmem:[%s508 + $0x8] sm:$0xff]
        %v537 = vld [vmem:[%s508 + $0x10] sm:$0xff]
        %v538 = vld [vmem:[%s508 + $0x18] sm:$0xff]
        %v539 = vld [vmem:[%s521] sm:$0x1]
        %v541 = vlaneseq
        %v542 = vshrl.u32 %v541, 7
        %v543 = vsub.s32 0, %v542
        %v544 = vrot.slane %v539, %v543
        %vm546 = vcmask 261120
        %v548 = vsel %vm546, %v534, 0
        %550 = vmatprep.subr.mxu0 0.0
        %551 = vmatpush1.msra.mxu0 0.0
        %552 = vmatprep.subr.mxu0 0.0
        %553 = vmatpush1.msra.mxu0 0.0
        %554 = vmatprep.subr.mxu0 0.0
        %555 = vmatpush1.msra.mxu0 0.0
        %556 = vmatprep.subr.mxu0 0.0
        %557 = vmatpush1.msra.mxu0 0.0
        %558 = vmatprep.subr.mxu0 0.0
        %559 = vmatpush1.msra.mxu0 0.0
        %560 = vmatprep.subr.mxu0 0.0
        %561 = vmatpush1.msra.mxu0 0.0
        %562 = vmatprep.subr.mxu0 0.0
        %563 = vmatpush1.msra.mxu0 0.0
        %564 = vmatprep.subr.mxu0 0.0
        %565 = vmatpush1.msra.mxu0 0.0
        %566 = vmatprep.subr.mxu0 0.0
        %567 = vmatpush1.msra.mxu0 0.0
        %568 = vmatprep.subr.mxu0 0.0
        %569 = vmatpush1.msra.mxu0 0.0
        %570 = vmatprep.subr.mxu0 0.0
        %571 = vmatpush1.msra.mxu0 0.0
        %572 = vmatprep.subr.mxu0 0.0
        %573 = vmatpush1.msra.mxu0 0.0
        %574 = vmatprep.subr.mxu0 0.0
        %575 = vmatpush1.msra.mxu0 %v538
        %576 = vmatprep.subr.mxu0 0.0
        %577 = vmatpush1.msra.mxu0 %v537
        %578 = vmatprep.subr.mxu0 0.0
        %579 = vmatpush1.msra.mxu0 %v536
        %580 = vmatprep.subr.mxu0 0.0
        %581 = vmatpush1.msra.mxu0 %v535
        %582 = vmatprep.subr.mxu0 0.0
        %583 = vmatpush2.msra.mxu0 0.0
        %584 = vmatprep.subr.mxu0 0.0
        %585 = vmatpush2.msra.mxu0 0.0
        %586 = vmatprep.subr.mxu0 0.0
        %587 = vmatpush2.msra.mxu0 0.0
        %588 = vmatprep.subr.mxu0 0.0
        %589 = vmatpush2.msra.mxu0 0.0
        %590 = vmatprep.subr.mxu0 0.0
        %591 = vmatpush2.msra.mxu0 0.0
        %592 = vmatprep.subr.mxu0 0.0
        %593 = vmatpush2.msra.mxu0 0.0
        %594 = vmatprep.subr.mxu0 0.0
        %595 = vmatpush2.msra.mxu0 0.0
        %596 = vmatprep.subr.mxu0 0.0
        %597 = vmatpush2.msra.mxu0 0.0
        %598 = vmatprep.subr.mxu0 0.0
        %599 = vmatpush2.msra.mxu0 0.0
        %600 = vmatprep.subr.mxu0 0.0
        %601 = vmatpush2.msra.mxu0 0.0
        %602 = vmatprep.subr.mxu0 0.0
        %603 = vmatpush2.msra.mxu0 0.0
        %604 = vmatprep.subr.mxu0 0.0
        %605 = vmatpush2.msra.mxu0 0.0
        %606 = vmatprep.subr.mxu0 0.0
        %607 = vmatpush2.msra.mxu0 0.0
        %608 = vmatprep.subr.mxu0 0.0
        %609 = vmatpush2.msra.mxu0 0.0
        %610 = vmatprep.subr.mxu0 0.0
        %611 = vmatpush2.msra.mxu0 0.0
        %612 = vmatprep.subr.mxu0 0.0
        %613 = vmatpush2.msra.mxu0 0.0
        %614 = vmatprep.mubr.f32.mxu0 0.0
        %615 = vmatmul.mubr.f32.gmra.mxu0 %v548
        %v616 = vpop.f32.mrf.mxu0
        %v617 = vadd.f32 %v544, %v616
        %v618 = vpop.f32.mrf.mxu0
        %619 = vdwg.mxu0
        %v620 = vld [vmem:[%s513] sm:$0xff]
        %v621 = vld [vmem:[%s513 + $0x8] sm:$0xff]
        %v622 = vld [vmem:[%s513 + $0x10] sm:$0xff]
        %v623 = vld [vmem:[%s513 + $0x18] sm:$0xff]
        %v624 = vld [vmem:[%s524] sm:$0x1]
        %v626 = vlaneseq
        %v627 = vshrl.u32 %v626, 7
        %v628 = vsub.s32 0, %v627
        %v629 = vrot.slane %v624, %v628
        %v632 = vsel %vm546, %v533, 0
        %634 = vmatprep.subr.mxu0 0.0
        %635 = vmatpush1.msra.mxu0 0.0
        %636 = vmatprep.subr.mxu0 0.0
        %637 = vmatpush1.msra.mxu0 0.0
        %638 = vmatprep.subr.mxu0 0.0
        %639 = vmatpush1.msra.mxu0 0.0
        %640 = vmatprep.subr.mxu0 0.0
        %641 = vmatpush1.msra.mxu0 0.0
        %642 = vmatprep.subr.mxu0 0.0
        %643 = vmatpush1.msra.mxu0 0.0
        %644 = vmatprep.subr.mxu0 0.0
        %645 = vmatpush1.msra.mxu0 0.0
        %646 = vmatprep.subr.mxu0 0.0
        %647 = vmatpush1.msra.mxu0 0.0
        %648 = vmatprep.subr.mxu0 0.0
        %649 = vmatpush1.msra.mxu0 0.0
        %650 = vmatprep.subr.mxu0 0.0
        %651 = vmatpush1.msra.mxu0 0.0
        %652 = vmatprep.subr.mxu0 0.0
        %653 = vmatpush1.msra.mxu0 0.0
        %654 = vmatprep.subr.mxu0 0.0
        %655 = vmatpush1.msra.mxu0 0.0
        %656 = vmatprep.subr.mxu0 0.0
        %657 = vmatpush1.msra.mxu0 0.0
        %658 = vmatprep.subr.mxu0 0.0
        %659 = vmatpush1.msra.mxu0 %v623
        %660 = vmatprep.subr.mxu0 0.0
        %661 = vmatpush1.msra.mxu0 %v622
        %662 = vmatprep.subr.mxu0 0.0
        %663 = vmatpush1.msra.mxu0 %v621
        %664 = vmatprep.subr.mxu0 0.0
        %665 = vmatpush1.msra.mxu0 %v620
        %666 = vmatprep.subr.mxu0 0.0
        %667 = vmatpush2.msra.mxu0 0.0
        %668 = vmatprep.subr.mxu0 0.0
        %669 = vmatpush2.msra.mxu0 0.0
        %670 = vmatprep.subr.mxu0 0.0
        %671 = vmatpush2.msra.mxu0 0.0
        %672 = vmatprep.subr.mxu0 0.0
        %673 = vmatpush2.msra.mxu0 0.0
        %674 = vmatprep.subr.mxu0 0.0
        %675 = vmatpush2.msra.mxu0 0.0
        %676 = vmatprep.subr.mxu0 0.0
        %677 = vmatpush2.msra.mxu0 0.0
        %678 = vmatprep.subr.mxu0 0.0
        %679 = vmatpush2.msra.mxu0 0.0
        %680 = vmatprep.subr.mxu0 0.0
        %681 = vmatpush2.msra.mxu0 0.0
        %682 = vmatprep.subr.mxu0 0.0
        %683 = vmatpush2.msra.mxu0 0.0
        %684 = vmatprep.subr.mxu0 0.0
        %685 = vmatpush2.msra.mxu0 0.0
        %686 = vmatprep.subr.mxu0 0.0
        %687 = vmatpush2.msra.mxu0 0.0
        %688 = vmatprep.subr.mxu0 0.0
        %689 = vmatpush2.msra.mxu0 0.0
        %690 = vmatprep.subr.mxu0 0.0
        %691 = vmatpush2.msra.mxu0 0.0
        %692 = vmatprep.subr.mxu0 0.0
        %693 = vmatpush2.msra.mxu0 0.0
        %694 = vmatprep.subr.mxu0 0.0
        %695 = vmatpush2.msra.mxu0 0.0
        %696 = vmatprep.subr.mxu0 0.0
        %697 = vmatpush2.msra.mxu0 0.0
        %698 = vmatprep.mubr.f32.mxu0 0.0
        %699 = vmatmul.mubr.f32.gmra.mxu0 %v632
        %v700 = vpop.f32.mrf.mxu0
        %v701 = vadd.f32 %v629, %v700
        %v702 = vpop.f32.mrf.mxu0
        %703 = vdwg.mxu0
        %v704 = vld [vmem:[%s518] sm:$0xff]
        %v705 = vld [vmem:[%s518 + $0x8] sm:$0xff]
        %v706 = vld [vmem:[%s518 + $0x10] sm:$0xff]
        %v707 = vld [vmem:[%s518 + $0x18] sm:$0xff]
        %v708 = vld [vmem:[%s527] sm:$0x1]
        %v710 = vlaneseq
        %v711 = vshrl.u32 %v710, 7
        %v712 = vsub.s32 0, %v711
        %v713 = vrot.slane %v708, %v712
        %715 = vmatprep.subr.mxu0 0.0
        %716 = vmatpush1.msra.mxu0 0.0
        %717 = vmatprep.subr.mxu0 0.0
        %718 = vmatpush1.msra.mxu0 0.0
        %719 = vmatprep.subr.mxu0 0.0
        %720 = vmatpush1.msra.mxu0 0.0
        %721 = vmatprep.subr.mxu0 0.0
        %722 = vmatpush1.msra.mxu0 0.0
        %723 = vmatprep.subr.mxu0 0.0
        %724 = vmatpush1.msra.mxu0 0.0
        %725 = vmatprep.subr.mxu0 0.0
        %726 = vmatpush1.msra.mxu0 0.0
        %727 = vmatprep.subr.mxu0 0.0
        %728 = vmatpush1.msra.mxu0 0.0
        %729 = vmatprep.subr.mxu0 0.0
        %730 = vmatpush1.msra.mxu0 0.0
        %731 = vmatprep.subr.mxu0 0.0
        %732 = vmatpush1.msra.mxu0 0.0
        %733 = vmatprep.subr.mxu0 0.0
        %734 = vmatpush1.msra.mxu0 0.0
        %735 = vmatprep.subr.mxu0 0.0
        %736 = vmatpush1.msra.mxu0 0.0
        %737 = vmatprep.subr.mxu0 0.0
        %738 = vmatpush1.msra.mxu0 0.0
        %739 = vmatprep.subr.mxu0 0.0
        %740 = vmatpush1.msra.mxu0 %v707
        %741 = vmatprep.subr.mxu0 0.0
        %742 = vmatpush1.msra.mxu0 %v706
        %743 = vmatprep.subr.mxu0 0.0
        %744 = vmatpush1.msra.mxu0 %v705
        %745 = vmatprep.subr.mxu0 0.0
        %746 = vmatpush1.msra.mxu0 %v704
        %747 = vmatprep.subr.mxu0 0.0
        %748 = vmatpush2.msra.mxu0 0.0
        %749 = vmatprep.subr.mxu0 0.0
        %750 = vmatpush2.msra.mxu0 0.0
        %751 = vmatprep.subr.mxu0 0.0
        %752 = vmatpush2.msra.mxu0 0.0
        %753 = vmatprep.subr.mxu0 0.0
        %754 = vmatpush2.msra.mxu0 0.0
        %755 = vmatprep.subr.mxu0 0.0
        %756 = vmatpush2.msra.mxu0 0.0
        %757 = vmatprep.subr.mxu0 0.0
        %758 = vmatpush2.msra.mxu0 0.0
        %759 = vmatprep.subr.mxu0 0.0
        %760 = vmatpush2.msra.mxu0 0.0
        %761 = vmatprep.subr.mxu0 0.0
        %762 = vmatpush2.msra.mxu0 0.0
        %763 = vmatprep.subr.mxu0 0.0
        %764 = vmatpush2.msra.mxu0 0.0
        %765 = vmatprep.subr.mxu0 0.0
        %766 = vmatpush2.msra.mxu0 0.0
        %767 = vmatprep.subr.mxu0 0.0
        %768 = vmatpush2.msra.mxu0 0.0
        %769 = vmatprep.subr.mxu0 0.0
        %770 = vmatpush2.msra.mxu0 0.0
        %771 = vmatprep.subr.mxu0 0.0
        %772 = vmatpush2.msra.mxu0 0.0
        %773 = vmatprep.subr.mxu0 0.0
        %774 = vmatpush2.msra.mxu0 0.0
        %775 = vmatprep.subr.mxu0 0.0
        %776 = vmatpush2.msra.mxu0 0.0
        %777 = vmatprep.subr.mxu0 0.0
        %778 = vmatpush2.msra.mxu0 0.0
        %779 = vmatprep.mubr.f32.mxu0 0.0
        %780 = vmatmul.mubr.f32.gmra.mxu0 %v632
        %v781 = vpop.f32.mrf.mxu0
        %v782 = vadd.f32 %v713, %v781
        %v783 = vpop.f32.mrf.mxu0
        %784 = vdwg.mxu0
        %vm785 = vcmask 130048
        %v787 = vsel %vm785, %v617, 0
        %v790 = vsel %vm785, %v701, 0
        %792 = vmatprep.subr.mxu0 0.0
        %793 = vmatpush1.xpose.msra.mxu0 0.0
        %794 = vmatprep.subr.mxu0 0.0
        %795 = vmatpush1.xpose.msra.mxu0 0.0
        %796 = vmatprep.subr.mxu0 0.0
        %797 = vmatpush1.xpose.msra.mxu0 0.0
        %798 = vmatprep.subr.mxu0 0.0
        %799 = vmatpush1.xpose.msra.mxu0 0.0
        %800 = vmatprep.subr.mxu0 0.0
        %801 = vmatpush1.xpose.msra.mxu0 0.0
        %802 = vmatprep.subr.mxu0 0.0
        %803 = vmatpush1.xpose.msra.mxu0 0.0
        %804 = vmatprep.subr.mxu0 0.0
        %805 = vmatpush1.xpose.msra.mxu0 0.0
        %806 = vmatprep.subr.mxu0 0.0
        %807 = vmatpush1.xpose.msra.mxu0 0.0
        %808 = vmatprep.subr.mxu0 0.0
        %809 = vmatpush1.xpose.msra.mxu0 0.0
        %810 = vmatprep.subr.mxu0 0.0
        %811 = vmatpush1.xpose.msra.mxu0 0.0
        %812 = vmatprep.subr.mxu0 0.0
        %813 = vmatpush1.xpose.msra.mxu0 0.0
        %814 = vmatprep.subr.mxu0 0.0
        %815 = vmatpush1.xpose.msra.mxu0 0.0
        %816 = vmatprep.subr.mxu0 0.0
        %817 = vmatpush1.xpose.msra.mxu0 0.0
        %818 = vmatprep.subr.mxu0 0.0
        %819 = vmatpush1.xpose.msra.mxu0 0.0
        %820 = vmatprep.subr.mxu0 0.0
        %821 = vmatpush1.xpose.msra.mxu0 0.0
        %822 = vmatprep.subr.mxu0 0.0
        %823 = vmatpush1.xpose.msra.mxu0 %v790
        %824 = vmatprep.subr.mxu0 0.0
        %825 = vmatpush2.xpose.msra.mxu0 0.0
        %826 = vmatprep.subr.mxu0 0.0
        %827 = vmatpush2.xpose.msra.mxu0 0.0
        %828 = vmatprep.subr.mxu0 0.0
        %829 = vmatpush2.xpose.msra.mxu0 0.0
        %830 = vmatprep.subr.mxu0 0.0
        %831 = vmatpush2.xpose.msra.mxu0 0.0
        %832 = vmatprep.subr.mxu0 0.0
        %833 = vmatpush2.xpose.msra.mxu0 0.0
        %834 = vmatprep.subr.mxu0 0.0
        %835 = vmatpush2.xpose.msra.mxu0 0.0
        %836 = vmatprep.subr.mxu0 0.0
        %837 = vmatpush2.xpose.msra.mxu0 0.0
        %838 = vmatprep.subr.mxu0 0.0
        %839 = vmatpush2.xpose.msra.mxu0 0.0
        %840 = vmatprep.subr.mxu0 0.0
        %841 = vmatpush2.xpose.msra.mxu0 0.0
        %842 = vmatprep.subr.mxu0 0.0
        %843 = vmatpush2.xpose.msra.mxu0 0.0
        %844 = vmatprep.subr.mxu0 0.0
        %845 = vmatpush2.xpose.msra.mxu0 0.0
        %846 = vmatprep.subr.mxu0 0.0
        %847 = vmatpush2.xpose.msra.mxu0 0.0
        %848 = vmatprep.subr.mxu0 0.0
        %849 = vmatpush2.xpose.msra.mxu0 0.0
        %850 = vmatprep.subr.mxu0 0.0
        %851 = vmatpush2.xpose.msra.mxu0 0.0
        %852 = vmatprep.subr.mxu0 0.0
        %853 = vmatpush2.xpose.msra.mxu0 0.0
        %854 = vmatprep.subr.mxu0 0.0
        %855 = vmatpush2.xpose.msra.mxu0 0.0
        %856 = vmatprep.mubr.f32.mxu0 0.0
        %857 = vmatmul.mubr.f32.gmra.mxu0 %v787
        %v858 = vpop.f32.mrf.mxu0
        %v859 = vadd.f32 0.0, %v858
        %v860 = vpop.f32.mrf.mxu0
        %861 = vdwg.mxu0
        %v862 = vmul.f32 %v859, 0.25
        %v863 = vld [vmem:[%s2] sm:$0xff]
        %v864 = vmul.f32 %v863, %v862
        %vm865 = vcmp.ne.f32.partialorder %v864, 0.0
        %v866 = vsel %vm865, %v864, -3e+38
        %vm867 = vcmask 64512
        %v868 = vsel %vm867, %v866, -inf
        %869 = vmax.xlane.f32.xlu0 %v868
        %v870 = vpop.xlane.xlu0 %869
        %v871 = vsub.f32 %v864, %v870
        %v872 = vsel %vm865, %v871, -1e+09
        %v873 = vmul.f32 %v872, 1.442695
        %v874 = vpow.pop %v873
        %v875 = vsel %vm867, %v874, 0.0
        %876 = vadd.xlane.f32.xlu0 %v875
        %v877 = vpop.xlane.xlu0 %876
        %vm878 = vcmp.gt.f32.partialorder %v877, 0.0
        %v879 = vsel %vm878, %v877, 1.0
        %v880 = vrcp.pop %v879
        %v881 = vmul.f32 %v874, %v880
        %v883 = vsel %vm867, %v881, 0
        %885 = vmatprep.subr.mxu0 0.0
        %886 = vmatpush1.msra.mxu0 0.0
        %887 = vmatprep.subr.mxu0 0.0
        %888 = vmatpush1.msra.mxu0 0.0
        %889 = vmatprep.subr.mxu0 0.0
        %890 = vmatpush1.msra.mxu0 0.0
        %891 = vmatprep.subr.mxu0 0.0
        %892 = vmatpush1.msra.mxu0 0.0
        %893 = vmatprep.subr.mxu0 0.0
        %894 = vmatpush1.msra.mxu0 0.0
        %895 = vmatprep.subr.mxu0 0.0
        %896 = vmatpush1.msra.mxu0 0.0
        %897 = vmatprep.subr.mxu0 0.0
        %898 = vmatpush1.msra.mxu0 0.0
        %899 = vmatprep.subr.mxu0 0.0
        %900 = vmatpush1.msra.mxu0 0.0
        %901 = vmatprep.subr.mxu0 0.0
        %902 = vmatpush1.msra.mxu0 0.0
        %903 = vmatprep.subr.mxu0 0.0
        %904 = vmatpush1.msra.mxu0 0.0
        %905 = vmatprep.subr.mxu0 0.0
        %906 = vmatpush1.msra.mxu0 0.0
        %907 = vmatprep.subr.mxu0 0.0
        %908 = vmatpush1.msra.mxu0 0.0
        %909 = vmatprep.subr.mxu0 0.0
        %910 = vmatpush1.msra.mxu0 0.0
        %911 = vmatprep.subr.mxu0 0.0
        %912 = vmatpush1.msra.mxu0 0.0
        %913 = vmatprep.subr.mxu0 0.0
        %914 = vmatpush1.msra.mxu0 0.0
        %915 = vmatprep.subr.mxu0 0.0
        %916 = vmatpush1.msra.mxu0 %v782
        %917 = vmatprep.subr.mxu0 0.0
        %918 = vmatpush2.msra.mxu0 0.0
        %919 = vmatprep.subr.mxu0 0.0
        %920 = vmatpush2.msra.mxu0 0.0
        %921 = vmatprep.subr.mxu0 0.0
        %922 = vmatpush2.msra.mxu0 0.0
        %923 = vmatprep.subr.mxu0 0.0
        %924 = vmatpush2.msra.mxu0 0.0
        %925 = vmatprep.subr.mxu0 0.0
        %926 = vmatpush2.msra.mxu0 0.0
        %927 = vmatprep.subr.mxu0 0.0
        %928 = vmatpush2.msra.mxu0 0.0
        %929 = vmatprep.subr.mxu0 0.0
        %930 = vmatpush2.msra.mxu0 0.0
        %931 = vmatprep.subr.mxu0 0.0
        %932 = vmatpush2.msra.mxu0 0.0
        %933 = vmatprep.subr.mxu0 0.0
        %934 = vmatpush2.msra.mxu0 0.0
        %935 = vmatprep.subr.mxu0 0.0
        %936 = vmatpush2.msra.mxu0 0.0
        %937 = vmatprep.subr.mxu0 0.0
        %938 = vmatpush2.msra.mxu0 0.0
        %939 = vmatprep.subr.mxu0 0.0
        %940 = vmatpush2.msra.mxu0 0.0
        %941 = vmatprep.subr.mxu0 0.0
        %942 = vmatpush2.msra.mxu0 0.0
        %943 = vmatprep.subr.mxu0 0.0
        %944 = vmatpush2.msra.mxu0 0.0
        %945 = vmatprep.subr.mxu0 0.0
        %946 = vmatpush2.msra.mxu0 0.0
        %947 = vmatprep.subr.mxu0 0.0
        %948 = vmatpush2.msra.mxu0 0.0
        %949 = vmatprep.mubr.f32.mxu0 0.0
        %950 = vmatmul.mubr.f32.gmra.mxu0 %v883
        %v951 = vpop.f32.mrf.mxu0
        %v952 = vadd.f32 0.0, %v951
        %v953 = vpop.f32.mrf.mxu0
        %954 = vdwg.mxu0
        %p955 = scmp.eq.s32.totalorder %s30, 0
        // Predicated region
        $region65: #{tpu_custom_call.1} parent=63 // pred_check
          %p956 = pneg %p955
        $region66: #{tpu_custom_call.1} parent=63 // pred_check_branch
          %958 = sbr.rel (%p956) target = $region68
        $region67: #{tpu_custom_call.1} parent=63 // pred_region
          %959 = vst.msk [vmem:[#allocation2] sm:$0xff] %vm546, 0.0
        $region68: #{tpu_custom_call.1} parent=63 // pred_fallthru
          _
        %v960 = vld [vmem:[#allocation2] sm:$0xff]
        %v961 = vld [vmem:[%s532] sm:$0xff]
        %v962 = vld [vmem:[%s532 + $0x8] sm:$0xff]
        %v964 = vsel %vm785, %v952, 0
        %966 = vmatprep.subr.mxu0 0.0
        %967 = vmatpush1.msra.mxu0 0.0
        %968 = vmatprep.subr.mxu0 0.0
        %969 = vmatpush1.msra.mxu0 0.0
        %970 = vmatprep.subr.mxu0 0.0
        %971 = vmatpush1.msra.mxu0 0.0
        %972 = vmatprep.subr.mxu0 0.0
        %973 = vmatpush1.msra.mxu0 0.0
        %974 = vmatprep.subr.mxu0 0.0
        %975 = vmatpush1.msra.mxu0 0.0
        %976 = vmatprep.subr.mxu0 0.0
        %977 = vmatpush1.msra.mxu0 0.0
        %978 = vmatprep.subr.mxu0 0.0
        %979 = vmatpush1.msra.mxu0 0.0
        %980 = vmatprep.subr.mxu0 0.0
        %981 = vmatpush1.msra.mxu0 0.0
        %982 = vmatprep.subr.mxu0 0.0
        %983 = vmatpush1.msra.mxu0 0.0
        %984 = vmatprep.subr.mxu0 0.0
        %985 = vmatpush1.msra.mxu0 0.0
        %986 = vmatprep.subr.mxu0 0.0
        %987 = vmatpush1.msra.mxu0 0.0
        %988 = vmatprep.subr.mxu0 0.0
        %989 = vmatpush1.msra.mxu0 0.0
        %990 = vmatprep.subr.mxu0 0.0
        %991 = vmatpush1.msra.mxu0 0.0
        %992 = vmatprep.subr.mxu0 0.0
        %993 = vmatpush1.msra.mxu0 0.0
        %994 = vmatprep.subr.mxu0 0.0
        %995 = vmatpush1.msra.mxu0 %v962
        %996 = vmatprep.subr.mxu0 0.0
        %997 = vmatpush1.msra.mxu0 %v961
        %998 = vmatprep.subr.mxu0 0.0
        %999 = vmatpush2.msra.mxu0 0.0
        %1000 = vmatprep.subr.mxu0 0.0
        %1001 = vmatpush2.msra.mxu0 0.0
        %1002 = vmatprep.subr.mxu0 0.0
        %1003 = vmatpush2.msra.mxu0 0.0
        %1004 = vmatprep.subr.mxu0 0.0
        %1005 = vmatpush2.msra.mxu0 0.0
        %1006 = vmatprep.subr.mxu0 0.0
        %1007 = vmatpush2.msra.mxu0 0.0
        %1008 = vmatprep.subr.mxu0 0.0
        %1009 = vmatpush2.msra.mxu0 0.0
        %1010 = vmatprep.subr.mxu0 0.0
        %1011 = vmatpush2.msra.mxu0 0.0
        %1012 = vmatprep.subr.mxu0 0.0
        %1013 = vmatpush2.msra.mxu0 0.0
        %1014 = vmatprep.subr.mxu0 0.0
        %1015 = vmatpush2.msra.mxu0 0.0
        %1016 = vmatprep.subr.mxu0 0.0
        %1017 = vmatpush2.msra.mxu0 0.0
        %1018 = vmatprep.subr.mxu0 0.0
        %1019 = vmatpush2.msra.mxu0 0.0
        %1020 = vmatprep.subr.mxu0 0.0
        %1021 = vmatpush2.msra.mxu0 0.0
        %1022 = vmatprep.subr.mxu0 0.0
        %1023 = vmatpush2.msra.mxu0 0.0
        %1024 = vmatprep.subr.mxu0 0.0
        %1025 = vmatpush2.msra.mxu0 0.0
        %1026 = vmatprep.subr.mxu0 0.0
        %1027 = vmatpush2.msra.mxu0 0.0
        %1028 = vmatprep.subr.mxu0 0.0
        %1029 = vmatpush2.msra.mxu0 0.0
        %1030 = vmatprep.mubr.f32.mxu0 0.0
        %1031 = vmatmul.mubr.f32.gmra.mxu0 %v964
        %v1032 = vpop.f32.mrf.mxu0
        %v1033 = vadd.f32 0.0, %v1032
        %v1034 = vpop.f32.mrf.mxu0
        %1035 = vdwg.mxu0
        %v1036 = vadd.f32 %v960, %v1033
        %1037 = vst.msk [vmem:[#allocation2] sm:$0xff] %vm546, %v1036
        %p1038 = scmp.eq.s32.totalorder %s30, 3
        // Predicated region
        $region69: #{tpu_custom_call.1} parent=63 // pred_check
          %p1039 = pneg %p1038
        $region70: #{tpu_custom_call.1} parent=63 // pred_check_branch
          %1041 = sbr.rel (%p1039) target = $region72
        $region71: #{tpu_custom_call.1} parent=63 // pred_region
          %v1042 = vld [vmem:[#allocation2] sm:$0xff]
          %v1043 = vld [vmem:[%s10] sm:$0x1]
          %v1045 = vlaneseq
          %v1046 = vshrl.u32 %v1045, 7
          %v1047 = vsub.s32 0, %v1046
          %v1048 = vrot.slane %v1043, %v1047
          %v1050 = vadd.f32 %v1042, %v1048
          %1051 = vst.msk [vmem:[%s495] sm:$0xff] %vm546, %v1050
        $region72: #{tpu_custom_call.1} parent=63 // pred_fallthru
          _
        %s1052 = sand.u32 %s321, 1
        %s1053 = scalar_lea.sflag [#allocation4], %s1052
        %s1054 = sand.u32 %s321, 1
        %s1055 = smul.addr %s1054, 8
        %s1056 = scalar_lea.vmem [#allocation3], %s1055
        // Predicated region
        $region73: #{tpu_custom_call.1} parent=63 // pred_check
          %p1057 = pneg %p331
        $region74: #{tpu_custom_call.1} parent=63 // pred_check_branch
          %1059 = sbr.rel (%p1057) target = $region76
        $region75: #{tpu_custom_call.1} parent=63 // pred_region
          %s1061 = ssub.s32 128, 128
          %1062 = vsyncadd %s1053, %s1061
          %s1063 = smul.addr %s29, 128
          %s1064 = scalar_lea.hbm %s11, %s1063
          %s1066 = sshll.u32 %s1056, 4
          %s1067 = int_to_ptr.vmem [resolvable:$true] %s1066
          %1069 = dma.vmem_to_hbm [thread:$0]  %s1067, 128, %s1064, %s1053
        $region76: #{tpu_custom_call.1} parent=63 // pred_fallthru
          _
      $region64: #{tpu_custom_call.1} parent=5 // pred_fallthru
        _
      %p1070 = scmp.le.s32.totalorder 2, %s20
      // Predicated region
      $region77: #{tpu_custom_call.1} parent=5 // pred_check
        %p1071 = pneg %p1070
      $region78: #{tpu_custom_call.1} parent=5 // pred_check_branch
        %1073 = sbr.rel (%p1071) target = $region80
      $region79: #{tpu_custom_call.1} parent=5 // pred_region
        %s1074 = ssub.s32 %s20, 2
        // Predicated region
        $region81: #{tpu_custom_call.1} parent=79 // pred_check
          %p1075 = pneg %p337
        $region82: #{tpu_custom_call.1} parent=79 // pred_check_branch
          %1077 = sbr.rel (%p1075) target = $region84
        $region83: #{tpu_custom_call.1} parent=79 // pred_region
          %s1078 = sand.u32 %s322, 1
          %s1079 = scalar_lea.sflag [#allocation4], %s1078
          %s1080 = sand.u32 %s322, 1
          %s1081 = smul.addr %s1080, 8
          %s1082 = scalar_lea.vmem [#allocation3], %s1081
          %1083 = dma.done %s1079, 128
        $region84: #{tpu_custom_call.1} parent=79 // pred_fallthru
          _
      $region80: #{tpu_custom_call.1} parent=5 // pred_fallthru
        _
    $region6: #{tpu_custom_call.1} parent=1 // loop_footer
      %s24 = sadd.s32 1, %s20
    $region7: #{tpu_custom_call.1} parent=1 // loop_footer_branch
      %19 = sbr.rel target = $region3
    $region8: #{tpu_custom_call.1} parent=1 // loop_exit
      _
    %1084 = vsyncpa [#allocation4], 1
    %s1085 = scalar_lea.sflag [#allocation4], 1
    %1086 = vsyncpa %s1085, 1

</llo_original>
